<compile_context>
chip_gen: v6e
topology: v6e:2x2x1
jax: 0.10.0
libtpu: 0.0.40
codegen_flags: <defaults>
</compile_context>

<pallas_src>
import jax
import jax.numpy as jnp
from jax.experimental import pallas as pl
from jax.experimental.pallas import tpu as pltpu


def _round_up(v, m):
    return (v + m - 1) // m * m


# -----------------------------------------------------------------------------
# Kernel
# -----------------------------------------------------------------------------
def critic_kernel(x_ref, w1_ref, b1_ref, w2_ref, b2_ref, w3_ref, b3_ref, o_ref):
    """One lane-dense batch tile of the 3-layer MLP.

    Shapes inside the kernel (batch on lanes):
      x_ref : (in_f,  Nt)
      wK    : (out_k, in_k)   -- PyTorch layout, used directly as W @ X
      bK    : (out_k, 1)      -- column bias, broadcast along lanes (VPU only)
      o_ref : (out_f, Nt)
    """
    x = x_ref[...]

    # Layer 1.  in_f == 1 is a degenerate K=1 matmul -> do it on the VPU as an
    # outer-product broadcast instead of paying MXU/FIFO latency for no reuse.
    if w1_ref.shape[1] == 1:
        h1 = w1_ref[...] * x + b1_ref[...]                       # (hid, Nt)
    else:
        h1 = (jnp.dot(w1_ref[...], x, preferred_element_type=jnp.float32)
              + b1_ref[...])
    h1 = jnp.maximum(h1, 0.0)

    # Layer 2 (MXU): (hid, hid) @ (hid, Nt)
    h2 = (jnp.dot(w2_ref[...], h1, preferred_element_type=jnp.float32)
          + b2_ref[...])
    h2 = jnp.maximum(h2, 0.0)

    # Layer 3 (MXU): (out_f, hid) @ (hid, Nt)
    out = (jnp.dot(w3_ref[...], h2, preferred_element_type=jnp.float32)
           + b3_ref[...])
    o_ref[...] = out.astype(o_ref.dtype)


# -----------------------------------------------------------------------------
# One-time parameter prep (hoisted out of the per-call forward)
# -----------------------------------------------------------------------------
def prepare_params(params):
    """Pad hidden width to a sublane multiple and reshape biases to columns.

    Zero padding is mathematically a no-op (zero rows/cols, ReLU(0)=0).
    Call once per parameter set and reuse the result across forward calls.
    """
    w1, b1, w2, b2, w3, b3 = params
    hid = w1.shape[0]
    in_f = w1.shape[1]
    out_f = w3.shape[0]
    hid_p = _round_up(hid, 8)

    w1p = jnp.zeros((hid_p, in_f), w1.dtype).at[:hid, :].set(w1)
    b1p = jnp.zeros((hid_p, 1), b1.dtype).at[:hid, 0].set(b1)
    w2p = jnp.zeros((hid_p, hid_p), w2.dtype).at[:hid, :hid].set(w2)
    b2p = jnp.zeros((hid_p, 1), b2.dtype).at[:hid, 0].set(b2)
    w3p = jnp.zeros((out_f, hid_p), w3.dtype).at[:, :hid].set(w3)
    b3p = b3.reshape(out_f, 1)
    return (w1p, b1p, w2p, b2p, w3p, b3p)


# -----------------------------------------------------------------------------
# Forward pass
# -----------------------------------------------------------------------------
def critic_forward(x, prepared_params, *, batch_tile=8192):
    """Forward pass of the Critic MLP.

    x               : (N, in_f)  -- PyTorch nn.Linear input convention.
    prepared_params : output of `prepare_params(params)` (cache across calls).
    Returns         : (N, out_f)
    """
    w1p, b1p, w2p, b2p, w3p, b3p = prepared_params
    n, in_f = x.shape
    hid_p = w1p.shape[0]
    out_f = w3p.shape[0]

    # ---- choose a lane-dense batch tile ------------------------------------
    lane = 128
    bt = max(lane, _round_up(batch_tile, lane))
    if n <= lane:
        tile = lane
    else:
        # At least 2 grid steps so the "parallel" axis can shard across both
        # TensorCores on v7x; capped at batch_tile so huge N still pipelines.
        tile = max(lane, min(bt, _round_up(pl.cdiv(n, 2), lane)))
    grid = (pl.cdiv(n, tile),)

    # Layout flip: batch -> lanes.  Free reshape when in_f == 1.
    xt = x.T                                                     # (in_f, n)

    def pinned(shape):
        return pl.BlockSpec(shape, lambda i: (0, 0))

    out_t = pl.pallas_call(
        critic_kernel,
        # Exact output shape: Pallas masks/clips the ragged final block, so no
        # host-side batch padding or post-slice (no extra HBM round trips).
        out_shape=jax.ShapeDtypeStruct((out_f, n), x.dtype),
        grid=grid,
        in_specs=[
            pl.BlockSpec((in_f, tile), lambda i: (0, i)),   # x tile, lane-dense
            pinned((hid_p, in_f)),                          # w1
            pinned((hid_p, 1)),                             # b1
            pinned((hid_p, hid_p)),                         # w2
            pinned((hid_p, 1)),                             # b2
            pinned((out_f, hid_p)),                         # w3
            pinned((out_f, 1)),                             # b3
        ],
        out_specs=pl.BlockSpec((out_f, tile), lambda i: (0, i)),
        compiler_params=pltpu.CompilerParams(
            dimension_semantics=("parallel",),
            # NOTE: with the default tile (8192 lanes) VMEM use is tiny
            # (x/out blocks ~32 KiB each, f32 intermediates ~512 KiB).  If the
            # tile is pushed past ~16K lanes or hidden_size is scaled up
            # (~2048+), set vmem_limit_bytes explicitly and K-tile w2
            # (re-derive for v7x's 64 MiB VMEM / v5e's 16 MiB scoped default).
        ),
    )(xt, w1p, b1p, w2p, b2p, w3p, b3p)

    # Undo the layout flip.  Free reshape when out_f == 1.
    return out_t.T


# -----------------------------------------------------------------------------
# Init / reference
# -----------------------------------------------------------------------------
def init_params(key, input_size=1, hidden_size=10, output_size=1,
                dtype=jnp.float32):
    """PyTorch-style Linear init: uniform +/- 1/sqrt(fan_in), weights (out, in)."""
    ks = jax.random.split(key, 6)

    def linear(kw, kb, fan_in, fan_out):
        bound = fan_in ** -0.5
        w = jax.random.uniform(kw, (fan_out, fan_in), dtype, -bound, bound)
        b = jax.random.uniform(kb, (fan_out,), dtype, -bound, bound)
        return w, b

    w1, b1 = linear(ks[0], ks[1], input_size, hidden_size)
    w2, b2 = linear(ks[2], ks[3], hidden_size, hidden_size)
    w3, b3 = linear(ks[4], ks[5], hidden_size, output_size)
    return (w1, b1, w2, b2, w3, b3)


def critic_reference(x, params):
    """Plain-JAX reference of the PyTorch forward pass (y = x @ W.T + b)."""
    w1, b1, w2, b2, w3, b3 = params
    h1 = jnp.maximum(x @ w1.T + b1, 0.0)
    h2 = jnp.maximum(h1 @ w2.T + b2, 0.0)
    return h2 @ w3.T + b3


if __name__ == "__main__":
    key = jax.random.PRNGKey(0)
    pkey, xkey = jax.random.split(key)

    input_size, hidden_size, output_size = 1, 10, 1
    # batch deliberately not a multiple of 128: exercises the 2-step grid
    # (v7x dual-TC path) and the ragged final block.
    batch = 200

    params = init_params(pkey, input_size, hidden_size, output_size)
    prepped = prepare_params(params)          # one-time padding, cached
    x = jax.random.normal(xkey, (batch, input_size), dtype=jnp.float32)

    y = jax.block_until_ready(critic_forward(x, prepped))
    y_ref = critic_reference(x, params)

    assert y.shape == (batch, output_size)
    assert jnp.allclose(y, y_ref, atol=1e-4, rtol=1e-4), "mismatch vs reference"

    print("KERNEL_OK")
</pallas_src>

<mosaic_0001>
module attributes {stable_mosaic.version = 11 : i64} {
  func.func @critic_kernel(%arg0: i32, %arg1: memref<1x128xf32, #tpu.memory_space<vmem>>, %arg2: memref<16x1xf32, #tpu.memory_space<vmem>>, %arg3: memref<16x1xf32, #tpu.memory_space<vmem>>, %arg4: memref<16x16xf32, #tpu.memory_space<vmem>>, %arg5: memref<16x1xf32, #tpu.memory_space<vmem>>, %arg6: memref<1x16xf32, #tpu.memory_space<vmem>>, %arg7: memref<1x1xf32, #tpu.memory_space<vmem>>, %arg8: memref<1x128xf32, #tpu.memory_space<vmem>>) attributes {dimension_semantics = [#tpu.dimension_semantics<parallel>], iteration_bounds = array<i64: 2>, scalar_prefetch = 0 : i64, scratch_operands = 0 : i64, tpu.core_type = #tpu.core_type<tc>, window_params = [{transform_indices = @transform_0, window_bounds = array<i64: 1, 128>}, {pipeline_mode = #tpu.pipeline_mode<synchronous>, transform_indices = @transform_1, window_bounds = array<i64: 16, 1>}, {pipeline_mode = #tpu.pipeline_mode<synchronous>, transform_indices = @transform_2, window_bounds = array<i64: 16, 1>}, {pipeline_mode = #tpu.pipeline_mode<synchronous>, transform_indices = @transform_3, window_bounds = array<i64: 16, 16>}, {pipeline_mode = #tpu.pipeline_mode<synchronous>, transform_indices = @transform_4, window_bounds = array<i64: 16, 1>}, {pipeline_mode = #tpu.pipeline_mode<synchronous>, transform_indices = @transform_5, window_bounds = array<i64: 1, 16>}, {pipeline_mode = #tpu.pipeline_mode<synchronous>, transform_indices = @transform_6, window_bounds = array<i64: 1, 1>}, {transform_indices = @transform_7, window_bounds = array<i64: 1, 128>}]} {
    %c0 = arith.constant 0 : index
    %c0_0 = arith.constant 0 : index
    %0 = vector.load %arg1[%c0, %c0_0] : memref<1x128xf32, #tpu.memory_space<vmem>>, vector<1x128xf32>
    %c0_1 = arith.constant 0 : index
    %c0_2 = arith.constant 0 : index
    %1 = vector.load %arg2[%c0_1, %c0_2] : memref<16x1xf32, #tpu.memory_space<vmem>>, vector<16x1xf32>
    %2 = vector.broadcast %1 : vector<16x1xf32> to vector<16x128xf32>
    %3 = vector.broadcast %0 : vector<1x128xf32> to vector<16x128xf32>
    %4 = arith.mulf %2, %3 : vector<16x128xf32>
    %c0_3 = arith.constant 0 : index
    %c0_4 = arith.constant 0 : index
    %5 = vector.load %arg3[%c0_3, %c0_4] : memref<16x1xf32, #tpu.memory_space<vmem>>, vector<16x1xf32>
    %6 = vector.broadcast %5 : vector<16x1xf32> to vector<16x128xf32>
    %7 = arith.addf %4, %6 : vector<16x128xf32>
    %cst = arith.constant 0.000000e+00 : f32
    %8 = vector.broadcast %cst : f32 to vector<16x128xf32>
    %9 = arith.maximumf %7, %8 : vector<16x128xf32>
    %c0_5 = arith.constant 0 : index
    %c0_6 = arith.constant 0 : index
    %10 = vector.load %arg4[%c0_5, %c0_6] : memref<16x16xf32, #tpu.memory_space<vmem>>, vector<16x16xf32>
    %cst_7 = arith.constant dense<0.000000e+00> : vector<16x128xf32>
    %11 = tpu.matmul %10, %9, %cst_7 {dimension_numbers = #tpu.dot_dimension_numbers<[1], [0], [0], [1], [0, 0, 1, 1], [], []>} : vector<16x16xf32>, vector<16x128xf32>, vector<16x128xf32> -> vector<16x128xf32>
    %c0_8 = arith.constant 0 : index
    %c0_9 = arith.constant 0 : index
    %12 = vector.load %arg5[%c0_8, %c0_9] : memref<16x1xf32, #tpu.memory_space<vmem>>, vector<16x1xf32>
    %13 = vector.broadcast %12 : vector<16x1xf32> to vector<16x128xf32>
    %14 = arith.addf %11, %13 : vector<16x128xf32>
    %cst_10 = arith.constant 0.000000e+00 : f32
    %15 = vector.broadcast %cst_10 : f32 to vector<16x128xf32>
    %16 = arith.maximumf %14, %15 : vector<16x128xf32>
    %c0_11 = arith.constant 0 : index
    %c0_12 = arith.constant 0 : index
    %17 = vector.load %arg6[%c0_11, %c0_12] : memref<1x16xf32, #tpu.memory_space<vmem>>, vector<1x16xf32>
    %cst_13 = arith.constant dense<0.000000e+00> : vector<1x128xf32>
    %18 = tpu.matmul %17, %16, %cst_13 {dimension_numbers = #tpu.dot_dimension_numbers<[1], [0], [0], [1], [0, 0, 1, 1], [], []>} : vector<1x16xf32>, vector<16x128xf32>, vector<1x128xf32> -> vector<1x128xf32>
    %c0_14 = arith.constant 0 : index
    %c0_15 = arith.constant 0 : index
    %19 = vector.load %arg7[%c0_14, %c0_15] : memref<1x1xf32, #tpu.memory_space<vmem>>, vector<1x1xf32>
    %20 = vector.broadcast %19 : vector<1x1xf32> to vector<1x128xf32>
    %21 = arith.addf %18, %20 : vector<1x128xf32>
    %c0_16 = arith.constant 0 : index
    %c0_17 = arith.constant 0 : index
    %22 = vector.load %arg8[%c0_16, %c0_17] : memref<1x128xf32, #tpu.memory_space<vmem>>, vector<1x128xf32>
    tpu.vector_store %arg8[%c0_16, %c0_17], %21 {strides = array<i32>} : memref<1x128xf32, #tpu.memory_space<vmem>>, vector<1x128xf32>,
    return
  }
  func.func @transform_0(%arg0: i32) -> (i32, i32) {
    %c0_i32 = arith.constant 0 : i32
    %c0_i32_0 = arith.constant 0 : i32
    return %c0_i32, %arg0 : i32, i32
  }
  func.func @transform_1(%arg0: i32) -> (i32, i32) {
    %c0_i32 = arith.constant 0 : i32
    %c0_i32_0 = arith.constant 0 : i32
    %c0_i32_1 = arith.constant 0 : i32
    return %c0_i32, %c0_i32_0 : i32, i32
  }
  func.func @transform_2(%arg0: i32) -> (i32, i32) {
    %c0_i32 = arith.constant 0 : i32
    %c0_i32_0 = arith.constant 0 : i32
    %c0_i32_1 = arith.constant 0 : i32
    return %c0_i32, %c0_i32_0 : i32, i32
  }
  func.func @transform_3(%arg0: i32) -> (i32, i32) {
    %c0_i32 = arith.constant 0 : i32
    %c0_i32_0 = arith.constant 0 : i32
    %c0_i32_1 = arith.constant 0 : i32
    return %c0_i32, %c0_i32_0 : i32, i32
  }
  func.func @transform_4(%arg0: i32) -> (i32, i32) {
    %c0_i32 = arith.constant 0 : i32
    %c0_i32_0 = arith.constant 0 : i32
    %c0_i32_1 = arith.constant 0 : i32
    return %c0_i32, %c0_i32_0 : i32, i32
  }
  func.func @transform_5(%arg0: i32) -> (i32, i32) {
    %c0_i32 = arith.constant 0 : i32
    %c0_i32_0 = arith.constant 0 : i32
    %c0_i32_1 = arith.constant 0 : i32
    return %c0_i32, %c0_i32_0 : i32, i32
  }
  func.func @transform_6(%arg0: i32) -> (i32, i32) {
    %c0_i32 = arith.constant 0 : i32
    %c0_i32_0 = arith.constant 0 : i32
    %c0_i32_1 = arith.constant 0 : i32
    return %c0_i32, %c0_i32_0 : i32, i32
  }
  func.func @transform_7(%arg0: i32) -> (i32, i32) {
    %c0_i32 = arith.constant 0 : i32
    %c0_i32_0 = arith.constant 0 : i32
    return %c0_i32, %arg0 : i32, i32
  }
}

</mosaic_0001>

<llo_original>
// kernel: tpu_custom_call.1
$region0: #{tpu_custom_call.1}
  #allocation0 [shape = 'u32[]', space=smem, size = 0x4, offset = 0x4, fixed_abs, tag = 'smem constant byte address 0x4 - core index']
  #allocation1 [shape = 'u32[144,128]{1,0:T(1,128)}', space=vmem, size = 0x12000, scoped, tag = 'internal scratch']
  #allocation2 [shape = 'f32[1,1]{1,0:T(1,128)S(1)}', space=vmem, size = 0x200, scoped, tag = 'scoped memory for tpu_custom_call.1']
  %s0 = inlined_call_operand.vmem [shape: f32[1,200], index: 0, kind: input, shape index: {}]
  %s1 = inlined_call_operand.vmem [shape: f32[16,1], index: 1, kind: input, shape index: {}]
  %s2 = inlined_call_operand.vmem [shape: f32[16,1], index: 2, kind: input, shape index: {}]
  %s3 = inlined_call_operand.vmem [shape: f32[16,16], index: 3, kind: input, shape index: {}]
  %s4 = inlined_call_operand.vmem [shape: f32[16,1], index: 4, kind: input, shape index: {}]
  %s5 = inlined_call_operand.vmem [shape: f32[1,16], index: 5, kind: input, shape index: {}]
  %s6 = inlined_call_operand.<no memory space> [shape: f32[1,1], index: 6, kind: input, shape index: {}]
  %s7 = inlined_call_operand.hbm [shape: f32[1,200], index: 7, kind: output, shape index: {}]
  %s8 = sld [smem:[#allocation0]]
  $region61: #{tpu_custom_call.1} parent=0
    _
  %s10 = ssub.s32 1, %s8
  %s11 = scalar_select 0, %s10, %s8
  %v12 = vstv %s6
  %13 = vst [vmem:[#allocation2] sm:$0x1] %v12
  $region1: #{tpu_custom_call.1} parent=0
    #allocation3 [shape = 'u8[1024]{0}', space=vmem, size = 0x400, scoped, tag = 'output window, operand 0']
    #allocation4 [shape = 's32[2]{0}', space=sflag, size = 0x8, scoped, tag = 'scoped memory for tpu_custom_call.1']
    %14 = vsyncpa [#allocation4], 0
    %s15 = scalar_lea.sflag [#allocation4], 1
    %16 = vsyncpa %s15, 0
    loop: start=0, step=1, limit=4
    $region2: #{tpu_custom_call.1} parent=1 // loop_pre_header
      _
    $region3: #{tpu_custom_call.1} parent=1 // loop_header
      %s18 = sphi 0, %s22
      %p19 = scmp.ge.s32.totalorder %s18, 4
      %s28 = sphi 0, %s30
      %s31 = sphi 0, %s28
      %s32 = sphi 0, %s31
      %s48 = sphi 0, %s32
      %s52 = sphi 0, %s52
      %s54 = sphi 0, %s52
      %s55 = sphi 0, %s54
      %s69 = sphi 0, %s55
      %s73 = sphi 0, %s73
      %s75 = sphi 0, %s73
      %s76 = sphi 0, %s75
      %s90 = sphi 0, %s76
      %s94 = sphi 0, %s94
      %s96 = sphi 0, %s94
      %s97 = sphi 0, %s96
      %s111 = sphi 0, %s97
      %s115 = sphi 0, %s115
      %s117 = sphi 0, %s115
      %s118 = sphi 0, %s117
      %s132 = sphi 0, %s118
      %s136 = sphi 0, %s136
      %s138 = sphi 0, %s136
      %s139 = sphi 0, %s138
      %s153 = sphi 0, %s139
      %s157 = sphi 0, %s157
      %s159 = sphi 0, %s157
      %s160 = sphi 0, %s159
      %s174 = sphi 0, %s160
      %s180 = sphi 0, %s182
      %s183 = sphi 0, %s180
      %s184 = sphi 0, %s183
      %s200 = sphi 0, %s184
    $region4: #{tpu_custom_call.1} parent=1 // loop_header_branch
      %21 = sbr.rel (%p19) target = $region8
    $region5: #{tpu_custom_call.1} parent=1 // loop_body
      %s23 = ssub.s32 %s18, 1
      %s24 = ssub.s32 %s18, 2
      %s25 = sadd.s32 %s18, 1
      %s26 = ssub.s32 %s18, %s25
      %p27 = scmp.eq.s32.totalorder %s26, 0
      %s29 = sadd.s32 %s28, 1
      %s30 = scalar_select %p27, %s28, %s29
      %p33 = pneg %p27
      %p34 = scmp.eq.s32.totalorder %s18, 1
      %p35 = por %p33, %p34
      %p36 = scmp.ne.s32.totalorder %s28, %s31
      %p37 = scmp.eq.s32.totalorder %s18, 0
      %p38 = por %p36, %p37
      %p39 = scmp.ne.s32.totalorder %s28, %s31
      %p40 = scmp.eq.s32.totalorder %s23, 1
      %p41 = por %p39, %p40
      %p42 = scmp.ne.s32.totalorder %s31, %s32
      %p43 = scmp.eq.s32.totalorder %s23, 0
      %p44 = por %p42, %p43
      %p45 = scmp.ne.s32.totalorder %s31, %s32
      %p46 = scmp.eq.s32.totalorder %s24, 1
      %p47 = por %p45, %p46
      %p49 = scmp.ne.s32.totalorder %s32, %s48
      %p50 = scmp.eq.s32.totalorder %s24, 0
      %p51 = por %p49, %p50
      %s53 = sadd.s32 %s52, 1
      %p56 = scmp.eq.s32.totalorder %s18, 1
      %p57 = scmp.ne.s32.totalorder %s52, %s54
      %p58 = scmp.eq.s32.totalorder %s18, 0
      %p59 = por %p57, %p58
      %p60 = scmp.ne.s32.totalorder %s52, %s54
      %p61 = scmp.eq.s32.totalorder %s23, 1
      %p62 = por %p60, %p61
      %p63 = scmp.ne.s32.totalorder %s54, %s55
      %p64 = scmp.eq.s32.totalorder %s23, 0
      %p65 = por %p63, %p64
      %p66 = scmp.ne.s32.totalorder %s54, %s55
      %p67 = scmp.eq.s32.totalorder %s24, 1
      %p68 = por %p66, %p67
      %p70 = scmp.ne.s32.totalorder %s55, %s69
      %p71 = scmp.eq.s32.totalorder %s24, 0
      %p72 = por %p70, %p71
      %s74 = sadd.s32 %s73, 1
      %p77 = scmp.eq.s32.totalorder %s18, 1
      %p78 = scmp.ne.s32.totalorder %s73, %s75
      %p79 = scmp.eq.s32.totalorder %s18, 0
      %p80 = por %p78, %p79
      %p81 = scmp.ne.s32.totalorder %s73, %s75
      %p82 = scmp.eq.s32.totalorder %s23, 1
      %p83 = por %p81, %p82
      %p84 = scmp.ne.s32.totalorder %s75, %s76
      %p85 = scmp.eq.s32.totalorder %s23, 0
      %p86 = por %p84, %p85
      %p87 = scmp.ne.s32.totalorder %s75, %s76
      %p88 = scmp.eq.s32.totalorder %s24, 1
      %p89 = por %p87, %p88
      %p91 = scmp.ne.s32.totalorder %s76, %s90
      %p92 = scmp.eq.s32.totalorder %s24, 0
      %p93 = por %p91, %p92
      %s95 = sadd.s32 %s94, 1
      %p98 = scmp.eq.s32.totalorder %s18, 1
      %p99 = scmp.ne.s32.totalorder %s94, %s96
      %p100 = scmp.eq.s32.totalorder %s18, 0
      %p101 = por %p99, %p100
      %p102 = scmp.ne.s32.totalorder %s94, %s96
      %p103 = scmp.eq.s32.totalorder %s23, 1
      %p104 = por %p102, %p103
      %p105 = scmp.ne.s32.totalorder %s96, %s97
      %p106 = scmp.eq.s32.totalorder %s23, 0
      %p107 = por %p105, %p106
      %p108 = scmp.ne.s32.totalorder %s96, %s97
      %p109 = scmp.eq.s32.totalorder %s24, 1
      %p110 = por %p108, %p109
      %p112 = scmp.ne.s32.totalorder %s97, %s111
      %p113 = scmp.eq.s32.totalorder %s24, 0
      %p114 = por %p112, %p113
      %s116 = sadd.s32 %s115, 1
      %p119 = scmp.eq.s32.totalorder %s18, 1
      %p120 = scmp.ne.s32.totalorder %s115, %s117
      %p121 = scmp.eq.s32.totalorder %s18, 0
      %p122 = por %p120, %p121
      %p123 = scmp.ne.s32.totalorder %s115, %s117
      %p124 = scmp.eq.s32.totalorder %s23, 1
      %p125 = por %p123, %p124
      %p126 = scmp.ne.s32.totalorder %s117, %s118
      %p127 = scmp.eq.s32.totalorder %s23, 0
      %p128 = por %p126, %p127
      %p129 = scmp.ne.s32.totalorder %s117, %s118
      %p130 = scmp.eq.s32.totalorder %s24, 1
      %p131 = por %p129, %p130
      %p133 = scmp.ne.s32.totalorder %s118, %s132
      %p134 = scmp.eq.s32.totalorder %s24, 0
      %p135 = por %p133, %p134
      %s137 = sadd.s32 %s136, 1
      %p140 = scmp.eq.s32.totalorder %s18, 1
      %p141 = scmp.ne.s32.totalorder %s136, %s138
      %p142 = scmp.eq.s32.totalorder %s18, 0
      %p143 = por %p141, %p142
      %p144 = scmp.ne.s32.totalorder %s136, %s138
      %p145 = scmp.eq.s32.totalorder %s23, 1
      %p146 = por %p144, %p145
      %p147 = scmp.ne.s32.totalorder %s138, %s139
      %p148 = scmp.eq.s32.totalorder %s23, 0
      %p149 = por %p147, %p148
      %p150 = scmp.ne.s32.totalorder %s138, %s139
      %p151 = scmp.eq.s32.totalorder %s24, 1
      %p152 = por %p150, %p151
      %p154 = scmp.ne.s32.totalorder %s139, %s153
      %p155 = scmp.eq.s32.totalorder %s24, 0
      %p156 = por %p154, %p155
      %s158 = sadd.s32 %s157, 1
      %p161 = scmp.eq.s32.totalorder %s18, 1
      %p162 = scmp.ne.s32.totalorder %s157, %s159
      %p163 = scmp.eq.s32.totalorder %s18, 0
      %p164 = por %p162, %p163
      %p165 = scmp.ne.s32.totalorder %s157, %s159
      %p166 = scmp.eq.s32.totalorder %s23, 1
      %p167 = por %p165, %p166
      %p168 = scmp.ne.s32.totalorder %s159, %s160
      %p169 = scmp.eq.s32.totalorder %s23, 0
      %p170 = por %p168, %p169
      %p171 = scmp.ne.s32.totalorder %s159, %s160
      %p172 = scmp.eq.s32.totalorder %s24, 1
      %p173 = por %p171, %p172
      %p175 = scmp.ne.s32.totalorder %s160, %s174
      %p176 = scmp.eq.s32.totalorder %s24, 0
      %p177 = por %p175, %p176
      %s178 = ssub.s32 %s18, %s25
      %p179 = scmp.eq.s32.totalorder %s178, 0
      %s181 = sadd.s32 %s180, 1
      %s182 = scalar_select %p179, %s180, %s181
      %p185 = pneg %p179
      %p186 = scmp.eq.s32.totalorder %s18, 1
      %p187 = por %p185, %p186
      %p188 = scmp.ne.s32.totalorder %s180, %s183
      %p189 = scmp.eq.s32.totalorder %s18, 0
      %p190 = por %p188, %p189
      %p191 = scmp.ne.s32.totalorder %s180, %s183
      %p192 = scmp.eq.s32.totalorder %s23, 1
      %p193 = por %p191, %p192
      %p194 = scmp.ne.s32.totalorder %s183, %s184
      %p195 = scmp.eq.s32.totalorder %s23, 0
      %p196 = por %p194, %p195
      %p197 = scmp.ne.s32.totalorder %s183, %s184
      %p198 = scmp.eq.s32.totalorder %s24, 1
      %p199 = por %p197, %p198
      %p201 = scmp.ne.s32.totalorder %s184, %s200
      %p202 = scmp.eq.s32.totalorder %s24, 0
      %p203 = por %p201, %p202
      %p204 = scmp.le.s32.totalorder 1, %s18
      %p205 = scmp.lt.s32.totalorder %s18, 3
      %p206 = pnand %p204, %p205
      %p207 = pneg %p206
      // Predicated region
      $region9: #{tpu_custom_call.1} parent=5 // pred_check
        _
      $region10: #{tpu_custom_call.1} parent=5 // pred_check_branch
        %209 = sbr.rel (%p206) target = $region12
      $region11: #{tpu_custom_call.1} parent=5 // pred_region
        %s210 = ssub.s32 %s18, 1
        // Predicated region
        $region13: #{tpu_custom_call.1} parent=11 // pred_check
          %p211 = pneg %p65
        $region14: #{tpu_custom_call.1} parent=11 // pred_check_branch
          %213 = sbr.rel (%p211) target = $region16
        $region15: #{tpu_custom_call.1} parent=11 // pred_region
          _
        $region16: #{tpu_custom_call.1} parent=11 // pred_fallthru
          _
        // Predicated region
        $region17: #{tpu_custom_call.1} parent=11 // pred_check
          %p214 = pneg %p86
        $region18: #{tpu_custom_call.1} parent=11 // pred_check_branch
          %216 = sbr.rel (%p214) target = $region20
        $region19: #{tpu_custom_call.1} parent=11 // pred_region
          _
        $region20: #{tpu_custom_call.1} parent=11 // pred_fallthru
          _
        // Predicated region
        $region21: #{tpu_custom_call.1} parent=11 // pred_check
          %p217 = pneg %p107
        $region22: #{tpu_custom_call.1} parent=11 // pred_check_branch
          %219 = sbr.rel (%p217) target = $region24
        $region23: #{tpu_custom_call.1} parent=11 // pred_region
          _
        $region24: #{tpu_custom_call.1} parent=11 // pred_fallthru
          _
        // Predicated region
        $region25: #{tpu_custom_call.1} parent=11 // pred_check
          %p220 = pneg %p128
        $region26: #{tpu_custom_call.1} parent=11 // pred_check_branch
          %222 = sbr.rel (%p220) target = $region28
        $region27: #{tpu_custom_call.1} parent=11 // pred_region
          _
        $region28: #{tpu_custom_call.1} parent=11 // pred_fallthru
          _
        // Predicated region
        $region29: #{tpu_custom_call.1} parent=11 // pred_check
          %p223 = pneg %p149
        $region30: #{tpu_custom_call.1} parent=11 // pred_check_branch
          %225 = sbr.rel (%p223) target = $region32
        $region31: #{tpu_custom_call.1} parent=11 // pred_region
          _
        $region32: #{tpu_custom_call.1} parent=11 // pred_fallthru
          _
        // Predicated region
        $region33: #{tpu_custom_call.1} parent=11 // pred_check
          %p226 = pneg %p170
        $region34: #{tpu_custom_call.1} parent=11 // pred_check_branch
          %228 = sbr.rel (%p226) target = $region36
        $region35: #{tpu_custom_call.1} parent=11 // pred_region
          _
        $region36: #{tpu_custom_call.1} parent=11 // pred_fallthru
          _
      $region12: #{tpu_custom_call.1} parent=5 // pred_fallthru
        _
      %p229 = scmp.lt.s32.totalorder %s18, 2
      // Predicated region
      $region37: #{tpu_custom_call.1} parent=5 // pred_check
        %p230 = pneg %p229
      $region38: #{tpu_custom_call.1} parent=5 // pred_check_branch
        %232 = sbr.rel (%p230) target = $region40
      $region39: #{tpu_custom_call.1} parent=5 // pred_region
        // Predicated region
        $region41: #{tpu_custom_call.1} parent=39 // pred_check
          %p233 = pneg %p38
        $region42: #{tpu_custom_call.1} parent=39 // pred_check_branch
          %235 = sbr.rel (%p233) target = $region44
        $region43: #{tpu_custom_call.1} parent=39 // pred_region
          %p236 = scmp.lt.s32.totalorder %s18, 1
          %s237 = scalar_select %p236, %s18, 1
          %s238 = scalar_lea.vmem %s0, %s237
        $region44: #{tpu_custom_call.1} parent=39 // pred_fallthru
          _
      $region40: #{tpu_custom_call.1} parent=5 // pred_fallthru
        _
      %p239 = scmp.le.s32.totalorder 1, %s18
      %p240 = scmp.lt.s32.totalorder %s18, 3
      %p241 = pnand %p239, %p240
      %p242 = pneg %p241
      // Predicated region
      $region45: #{tpu_custom_call.1} parent=5 // pred_check
        _
      $region46: #{tpu_custom_call.1} parent=5 // pred_check_branch
        %244 = sbr.rel (%p241) target = $region48
      $region47: #{tpu_custom_call.1} parent=5 // pred_region
        %s245 = ssub.s32 %s18, 1
        %p246 = scmp.lt.s32.totalorder %s23, 1
        %s247 = scalar_select %p246, %s23, 1
        %s248 = scalar_lea.vmem %s0, %s247
        %p249 = pneg %p44
        %p250 = pneg %p41
        %p251 = pneg %p65
        %p252 = pneg %p62
        %p253 = pneg %p86
        %p254 = pneg %p83
        %p255 = pneg %p107
        %p256 = pneg %p104
        %p257 = pneg %p128
        %p258 = pneg %p125
        %p259 = pneg %p149
        %p260 = pneg %p146
        %p261 = pneg %p170
        %p262 = pneg %p167
        %p263 = pneg %p196
        %p264 = pneg %p193
        %s265 = sand.u32 %s183, 1
        %s266 = scalar_lea.sflag [#allocation4], %s265
        %s267 = sand.u32 %s183, 1
        %s268 = scalar_lea.vmem [#allocation3], %s267
        %p269 = scmp.lt.s32.totalorder %s23, 1
        %s270 = scalar_select %p269, %s23, 1
        %s271 = scalar_lea.vmem %s0, %s270
        %v272 = vld [vmem:[%s271] sm:$0x1]
        %v273 = vld [vmem:[%s1] sm:$0xff]
        %v274 = vld [vmem:[%s1 + $0x8] sm:$0xff]
        %276 = vset.pattern.permute.xlu0 0
        %277 = vperm.xlu0 %276, %v273
        %v278 = vpop.permute.xlu0 %277
        %281 = vset.pattern.permute.xlu0 0
        %282 = vperm.xlu0 %281, %v274
        %v283 = vpop.permute.xlu0 %282
        %v286 = vlaneseq
        %v287 = vshrl.u32 %v286, 7
        %v288 = vsub.s32 0, %v287
        %v289 = vrot.slane %v272, %v288
        %v291 = vmul.f32 %v278, %v289
        %v292 = vmul.f32 %v283, %v289
        %v293 = vld [vmem:[%s2] sm:$0xff]
        %v294 = vld [vmem:[%s2 + $0x8] sm:$0xff]
        %296 = vset.pattern.permute.xlu0 0
        %297 = vperm.xlu0 %296, %v293
        %v298 = vpop.permute.xlu0 %297
        %301 = vset.pattern.permute.xlu0 0
        %302 = vperm.xlu0 %301, %v294
        %v303 = vpop.permute.xlu0 %302
        %v305 = vadd.f32 %v291, %v298
        %v306 = vadd.f32 %v292, %v303
        %v307 = vmax.f32 %v305, 0.0
        %v308 = vmax.f32 %v306, 0.0
        %v309 = vld [vmem:[%s3] sm:$0xff]
        %v310 = vld [vmem:[%s3 + $0x8] sm:$0xff]
        %v311 = vld [vmem:[%s4] sm:$0xff]
        %v312 = vld [vmem:[%s4 + $0x8] sm:$0xff]
        %314 = vset.pattern.permute.xlu0 0
        %315 = vperm.xlu0 %314, %v311
        %v316 = vpop.permute.xlu0 %315
        %319 = vset.pattern.permute.xlu0 0
        %320 = vperm.xlu0 %319, %v312
        %v321 = vpop.permute.xlu0 %320
        %vm323 = vcmask 130048
        %v325 = vsel %vm323, %v309, 0
        %v328 = vsel %vm323, %v310, 0
        %330 = vmatprep.subr.mxu0 0.0
        %331 = vmatpush1.msra.mxu0 0.0
        %332 = vmatprep.subr.mxu0 0.0
        %333 = vmatpush1.msra.mxu0 0.0
        %334 = vmatprep.subr.mxu0 0.0
        %335 = vmatpush1.msra.mxu0 0.0
        %336 = vmatprep.subr.mxu0 0.0
        %337 = vmatpush1.msra.mxu0 0.0
        %338 = vmatprep.subr.mxu0 0.0
        %339 = vmatpush1.msra.mxu0 0.0
        %340 = vmatprep.subr.mxu0 0.0
        %341 = vmatpush1.msra.mxu0 0.0
        %342 = vmatprep.subr.mxu0 0.0
        %343 = vmatpush1.msra.mxu0 0.0
        %344 = vmatprep.subr.mxu0 0.0
        %345 = vmatpush1.msra.mxu0 0.0
        %346 = vmatprep.subr.mxu0 0.0
        %347 = vmatpush1.msra.mxu0 0.0
        %348 = vmatprep.subr.mxu0 0.0
        %349 = vmatpush1.msra.mxu0 0.0
        %350 = vmatprep.subr.mxu0 0.0
        %351 = vmatpush1.msra.mxu0 0.0
        %352 = vmatprep.subr.mxu0 0.0
        %353 = vmatpush1.msra.mxu0 0.0
        %354 = vmatprep.subr.mxu0 0.0
        %355 = vmatpush1.msra.mxu0 0.0
        %356 = vmatprep.subr.mxu0 0.0
        %357 = vmatpush1.msra.mxu0 0.0
        %358 = vmatprep.subr.mxu0 0.0
        %359 = vmatpush1.msra.mxu0 %v308
        %360 = vmatprep.subr.mxu0 0.0
        %361 = vmatpush1.msra.mxu0 %v307
        %362 = vmatprep.subr.mxu0 0.0
        %363 = vmatpush2.msra.mxu0 0.0
        %364 = vmatprep.subr.mxu0 0.0
        %365 = vmatpush2.msra.mxu0 0.0
        %366 = vmatprep.subr.mxu0 0.0
        %367 = vmatpush2.msra.mxu0 0.0
        %368 = vmatprep.subr.mxu0 0.0
        %369 = vmatpush2.msra.mxu0 0.0
        %370 = vmatprep.subr.mxu0 0.0
        %371 = vmatpush2.msra.mxu0 0.0
        %372 = vmatprep.subr.mxu0 0.0
        %373 = vmatpush2.msra.mxu0 0.0
        %374 = vmatprep.subr.mxu0 0.0
        %375 = vmatpush2.msra.mxu0 0.0
        %376 = vmatprep.subr.mxu0 0.0
        %377 = vmatpush2.msra.mxu0 0.0
        %378 = vmatprep.subr.mxu0 0.0
        %379 = vmatpush2.msra.mxu0 0.0
        %380 = vmatprep.subr.mxu0 0.0
        %381 = vmatpush2.msra.mxu0 0.0
        %382 = vmatprep.subr.mxu0 0.0
        %383 = vmatpush2.msra.mxu0 0.0
        %384 = vmatprep.subr.mxu0 0.0
        %385 = vmatpush2.msra.mxu0 0.0
        %386 = vmatprep.subr.mxu0 0.0
        %387 = vmatpush2.msra.mxu0 0.0
        %388 = vmatprep.subr.mxu0 0.0
        %389 = vmatpush2.msra.mxu0 0.0
        %390 = vmatprep.subr.mxu0 0.0
        %391 = vmatpush2.msra.mxu0 0.0
        %392 = vmatprep.subr.mxu0 0.0
        %393 = vmatpush2.msra.mxu0 0.0
        %394 = vmatprep.mubr.f32.mxu0 0.0
        %395 = vmatmul.mubr.f32.gmra.mxu0 %v325
        %v396 = vpop.f32.mrf.mxu0
        %v397 = vadd.f32 %v316, %v396
        %v398 = vpop.f32.mrf.mxu0
        %399 = vmatprep.mubr.f32.mxu0 0.0
        %400 = vmatmul.mubr.f32.gmra.mxu0 %v328
        %v401 = vpop.f32.mrf.mxu0
        %v402 = vadd.f32 %v321, %v401
        %v403 = vpop.f32.mrf.mxu0
        %404 = vdwg.mxu0
        %v405 = vmax.f32 %v397, 0.0
        %v406 = vmax.f32 %v402, 0.0
        %v407 = vld [vmem:[%s5] sm:$0x1]
        %v408 = vld [vmem:[#allocation2] sm:$0x1]
        %410 = vset.pattern.permute.xlu0 0
        %411 = vperm.xlu0 %410, %v408
        %v412 = vpop.permute.xlu0 %411
        %v414 = vlaneseq
        %v415 = vshrl.u32 %v414, 7
        %v416 = vsub.s32 0, %v415
        %v417 = vrot.slane %v412, %v416
        %v419 = vsel %vm323, %v407, 0
        %421 = vmatprep.subr.mxu0 0.0
        %422 = vmatpush1.msra.mxu0 0.0
        %423 = vmatprep.subr.mxu0 0.0
        %424 = vmatpush1.msra.mxu0 0.0
        %425 = vmatprep.subr.mxu0 0.0
        %426 = vmatpush1.msra.mxu0 0.0
        %427 = vmatprep.subr.mxu0 0.0
        %428 = vmatpush1.msra.mxu0 0.0
        %429 = vmatprep.subr.mxu0 0.0
        %430 = vmatpush1.msra.mxu0 0.0
        %431 = vmatprep.subr.mxu0 0.0
        %432 = vmatpush1.msra.mxu0 0.0
        %433 = vmatprep.subr.mxu0 0.0
        %434 = vmatpush1.msra.mxu0 0.0
        %435 = vmatprep.subr.mxu0 0.0
        %436 = vmatpush1.msra.mxu0 0.0
        %437 = vmatprep.subr.mxu0 0.0
        %438 = vmatpush1.msra.mxu0 0.0
        %439 = vmatprep.subr.mxu0 0.0
        %440 = vmatpush1.msra.mxu0 0.0
        %441 = vmatprep.subr.mxu0 0.0
        %442 = vmatpush1.msra.mxu0 0.0
        %443 = vmatprep.subr.mxu0 0.0
        %444 = vmatpush1.msra.mxu0 0.0
        %445 = vmatprep.subr.mxu0 0.0
        %446 = vmatpush1.msra.mxu0 0.0
        %447 = vmatprep.subr.mxu0 0.0
        %448 = vmatpush1.msra.mxu0 0.0
        %449 = vmatprep.subr.mxu0 0.0
        %450 = vmatpush1.msra.mxu0 %v406
        %451 = vmatprep.subr.mxu0 0.0
        %452 = vmatpush1.msra.mxu0 %v405
        %453 = vmatprep.subr.mxu0 0.0
        %454 = vmatpush2.msra.mxu0 0.0
        %455 = vmatprep.subr.mxu0 0.0
        %456 = vmatpush2.msra.mxu0 0.0
        %457 = vmatprep.subr.mxu0 0.0
        %458 = vmatpush2.msra.mxu0 0.0
        %459 = vmatprep.subr.mxu0 0.0
        %460 = vmatpush2.msra.mxu0 0.0
        %461 = vmatprep.subr.mxu0 0.0
        %462 = vmatpush2.msra.mxu0 0.0
        %463 = vmatprep.subr.mxu0 0.0
        %464 = vmatpush2.msra.mxu0 0.0
        %465 = vmatprep.subr.mxu0 0.0
        %466 = vmatpush2.msra.mxu0 0.0
        %467 = vmatprep.subr.mxu0 0.0
        %468 = vmatpush2.msra.mxu0 0.0
        %469 = vmatprep.subr.mxu0 0.0
        %470 = vmatpush2.msra.mxu0 0.0
        %471 = vmatprep.subr.mxu0 0.0
        %472 = vmatpush2.msra.mxu0 0.0
        %473 = vmatprep.subr.mxu0 0.0
        %474 = vmatpush2.msra.mxu0 0.0
        %475 = vmatprep.subr.mxu0 0.0
        %476 = vmatpush2.msra.mxu0 0.0
        %477 = vmatprep.subr.mxu0 0.0
        %478 = vmatpush2.msra.mxu0 0.0
        %479 = vmatprep.subr.mxu0 0.0
        %480 = vmatpush2.msra.mxu0 0.0
        %481 = vmatprep.subr.mxu0 0.0
        %482 = vmatpush2.msra.mxu0 0.0
        %483 = vmatprep.subr.mxu0 0.0
        %484 = vmatpush2.msra.mxu0 0.0
        %485 = vmatprep.mubr.f32.mxu0 0.0
        %486 = vmatmul.mubr.f32.gmra.mxu0 %v419
        %v487 = vpop.f32.mrf.mxu0
        %v488 = vadd.f32 %v417, %v487
        %v489 = vpop.f32.mrf.mxu0
        %490 = vdwg.mxu0
        %491 = vst [vmem:[%s268] sm:$0x1] %v488
        %s492 = sand.u32 %s183, 1
        %s493 = scalar_lea.sflag [#allocation4], %s492
        %s494 = sand.u32 %s183, 1
        %s495 = scalar_lea.vmem [#allocation3], %s494
        // Predicated region
        $region49: #{tpu_custom_call.1} parent=47 // pred_check
          %p496 = pneg %p193
        $region50: #{tpu_custom_call.1} parent=47 // pred_check_branch
          %498 = sbr.rel (%p496) target = $region52
        $region51: #{tpu_custom_call.1} parent=47 // pred_region
          %s500 = ssub.s32 16, 16
          %501 = vsyncadd %s493, %s500
          %s502 = smul.addr %s23, 16
          %s503 = scalar_lea.hbm %s7, %s502
          %s505 = sshll.u32 %s495, 4
          %s506 = int_to_ptr.vmem [resolvable:$true] %s505
          %508 = dma.vmem_to_hbm [thread:$0]  %s506, 16, %s503, %s493
        $region52: #{tpu_custom_call.1} parent=47 // pred_fallthru
          _
      $region48: #{tpu_custom_call.1} parent=5 // pred_fallthru
        _
      %p509 = scmp.le.s32.totalorder 2, %s18
      // Predicated region
      $region53: #{tpu_custom_call.1} parent=5 // pred_check
        %p510 = pneg %p509
      $region54: #{tpu_custom_call.1} parent=5 // pred_check_branch
        %512 = sbr.rel (%p510) target = $region56
      $region55: #{tpu_custom_call.1} parent=5 // pred_region
        %s513 = ssub.s32 %s18, 2
        // Predicated region
        $region57: #{tpu_custom_call.1} parent=55 // pred_check
          %p514 = pneg %p199
        $region58: #{tpu_custom_call.1} parent=55 // pred_check_branch
          %516 = sbr.rel (%p514) target = $region60
        $region59: #{tpu_custom_call.1} parent=55 // pred_region
          %s517 = sand.u32 %s184, 1
          %s518 = scalar_lea.sflag [#allocation4], %s517
          %s519 = sand.u32 %s184, 1
          %s520 = scalar_lea.vmem [#allocation3], %s519
          %521 = dma.done %s518, 16
        $region60: #{tpu_custom_call.1} parent=55 // pred_fallthru
          _
      $region56: #{tpu_custom_call.1} parent=5 // pred_fallthru
        _
    $region6: #{tpu_custom_call.1} parent=1 // loop_footer
      %s22 = sadd.s32 1, %s18
    $region7: #{tpu_custom_call.1} parent=1 // loop_footer_branch
      %17 = sbr.rel target = $region3
    $region8: #{tpu_custom_call.1} parent=1 // loop_exit
      _
    %522 = vsyncpa [#allocation4], 1
    %s523 = scalar_lea.sflag [#allocation4], 1
    %524 = vsyncpa %s523, 1

</llo_original>
